<compile_context>
chip_gen: v5e
topology: v5e:2x2
jax: 0.10.0
libtpu: 0.0.40
codegen_flags: <defaults>
</compile_context>

<pallas_src>
import jax
import jax.numpy as jnp
from jax.experimental import pallas as pl
from jax.experimental.pallas import tpu as pltpu


def _grad_nopad_kernel(x_ref, o_ref, pad_ref):
    # x_ref / o_ref: (NP, H, W)      block of image planes
    # pad_ref:       (NP, H+2, W+2)  f32 scratch: zero-padded copy of the planes
    NP, H, W = o_ref.shape

    # Re-establish the zero border every step (scratch persists across grid
    # iterations; the interior is fully overwritten below, so only the 1-pixel
    # frame needs zeroing).  Safe regardless of how the parallel axis is sharded.
    zrow = jnp.zeros((NP, 1, W + 2), jnp.float32)
    zcol = jnp.zeros((NP, H, 1), jnp.float32)
    pad_ref[:, 0:1, :] = zrow
    pad_ref[:, H + 1:H + 2, :] = zrow
    pad_ref[:, 1:H + 1, 0:1] = zcol
    pad_ref[:, 1:H + 1, W + 1:W + 2] = zcol
    pad_ref[:, 1:H + 1, 1:W + 1] = x_ref[...].astype(jnp.float32)

    # 3x3 tap windows: a_ij[p, r, c] = x[p, r + i - 1, c + j - 1], zero outside.
    a00 = pad_ref[:, 0:H, 0:W]
    a01 = pad_ref[:, 0:H, 1:W + 1]
    a02 = pad_ref[:, 0:H, 2:W + 2]
    a10 = pad_ref[:, 1:H + 1, 0:W]
    a12 = pad_ref[:, 1:H + 1, 2:W + 2]
    a20 = pad_ref[:, 2:H + 2, 0:W]
    a21 = pad_ref[:, 2:H + 2, 1:W + 1]
    a22 = pad_ref[:, 2:H + 2, 2:W + 2]

    # kernel_v = [[1, 2, 1], [0, 0, 0], [-1, -2, -1]]
    v = (a00 - a20) + (a02 - a22) + 2.0 * (a01 - a21)
    # kernel_h = [[-1, 0, 1], [-2, 0, 2], [-1, 0, 1]]
    h = (a02 - a00) + (a22 - a20) + 2.0 * (a12 - a10)

    o_ref[...] = jnp.sqrt(v * v + h * h + 1e-6).astype(o_ref.dtype)


def get_gradient_nopadding_pallas(x_nchw, vmem_budget_bytes=8 << 20):
    """x_nchw: (B, C, H, W) -> (B, C, H, W), matching the PyTorch module."""
    B, C, H, W = x_nchw.shape
    BC = B * C
    planes = x_nchw.reshape(BC, H, W)

    # Pick how many planes to process per grid step: largest divisor of B*C whose
    # double-buffered input/output blocks + f32 padded scratch fit the VMEM budget.
    itemsize = jnp.dtype(x_nchw.dtype).itemsize
    per_plane = 2 * (H * W * itemsize) * 2 + (H + 2) * (W + 2) * 4
    np_max = max(1, vmem_budget_bytes // per_plane)
    npl = 1
    for d in range(1, min(BC, np_max) + 1):
        if BC % d == 0:
            npl = d

    out = pl.pallas_call(
        _grad_nopad_kernel,
        out_shape=jax.ShapeDtypeStruct((BC, H, W), x_nchw.dtype),
        grid_spec=pltpu.PrefetchScalarGridSpec(
            num_scalar_prefetch=0,
            grid=(BC // npl,),
            in_specs=[pl.BlockSpec((npl, H, W), lambda i: (i, 0, 0))],
            out_specs=pl.BlockSpec((npl, H, W), lambda i: (i, 0, 0)),
            scratch_shapes=[pltpu.VMEM((npl, H + 2, W + 2), jnp.float32)],
        ),
        compiler_params=pltpu.CompilerParams(
            dimension_semantics=("parallel",)),
    )(planes)
    return out.reshape(B, C, H, W)


def get_gradient_nopadding_reference(x):
    # Pure-JAX reference matching the PyTorch module (NCHW, per-channel conv).
    kv = jnp.array([[1.0, 2.0, 1.0], [0.0, 0.0, 0.0], [-1.0, -2.0, -1.0]],
                   jnp.float32).reshape(1, 1, 3, 3)
    kh = jnp.array([[-1.0, 0.0, 1.0], [-2.0, 0.0, 2.0], [-1.0, 0.0, 1.0]],
                   jnp.float32).reshape(1, 1, 3, 3)
    B, C, H, W = x.shape
    xi = x.reshape(B * C, 1, H, W)

    def conv(t, k):
        return jax.lax.conv_general_dilated(
            t, k, window_strides=(1, 1), padding=((1, 1), (1, 1)),
            dimension_numbers=("NCHW", "OIHW", "NCHW"))

    v = conv(xi, kv)
    h = conv(xi, kh)
    out = jnp.sqrt(v * v + h * h + 1e-6)
    return out.reshape(B, C, H, W)


if __name__ == "__main__":
    key = jax.random.PRNGKey(0)
    B, C, H, W = 2, 4, 16, 16
    x = jax.random.normal(key, (B, C, H, W), jnp.float32)

    out = jax.block_until_ready(get_gradient_nopadding_pallas(x))
    ref = get_gradient_nopadding_reference(x)

    assert out.shape == ref.shape
    assert bool(jnp.allclose(out, ref, atol=1e-4, rtol=1e-4)), "mismatch vs reference"
    print("KERNEL_OK")
</pallas_src>

<mosaic_0001>
module attributes {stable_mosaic.version = 11 : i64} {
  func.func @_grad_nopad_kernel(%arg0: i32, %arg1: memref<8x16x16xf32, #tpu.memory_space<vmem>>, %arg2: memref<8x16x16xf32, #tpu.memory_space<vmem>>, %arg3: memref<8x18x18xf32, #tpu.memory_space<vmem>>) attributes {dimension_semantics = [#tpu.dimension_semantics<parallel>], iteration_bounds = array<i64: 1>, scalar_prefetch = 0 : i64, scratch_operands = 1 : i64, tpu.core_type = #tpu.core_type<tc>, window_params = [{transform_indices = @transform_0, window_bounds = array<i64: 8, 16, 16>}, {transform_indices = @transform_1, window_bounds = array<i64: 8, 16, 16>}]} {
    %cst = arith.constant 0.000000e+00 : f32
    %0 = vector.broadcast %cst : f32 to vector<8x1x18xf32>
    %cst_0 = arith.constant 0.000000e+00 : f32
    %1 = vector.broadcast %cst_0 : f32 to vector<8x16x1xf32>
    %c0 = arith.constant 0 : index
    %c0_1 = arith.constant 0 : index
    %c0_2 = arith.constant 0 : index
    %2 = vector.load %arg3[%c0, %c0_1, %c0_2] : memref<8x18x18xf32, #tpu.memory_space<vmem>>, vector<8x1x18xf32>
    tpu.vector_store %arg3[%c0, %c0_1, %c0_2], %0 {strides = array<i32>} : memref<8x18x18xf32, #tpu.memory_space<vmem>>, vector<8x1x18xf32>,
    %c0_3 = arith.constant 0 : index
    %c17 = arith.constant 17 : index
    %c0_4 = arith.constant 0 : index
    %3 = vector.load %arg3[%c0_3, %c17, %c0_4] : memref<8x18x18xf32, #tpu.memory_space<vmem>>, vector<8x1x18xf32>
    tpu.vector_store %arg3[%c0_3, %c17, %c0_4], %0 {strides = array<i32>} : memref<8x18x18xf32, #tpu.memory_space<vmem>>, vector<8x1x18xf32>,
    %c0_5 = arith.constant 0 : index
    %c1 = arith.constant 1 : index
    %c0_6 = arith.constant 0 : index
    %4 = vector.load %arg3[%c0_5, %c1, %c0_6] : memref<8x18x18xf32, #tpu.memory_space<vmem>>, vector<8x16x1xf32>
    tpu.vector_store %arg3[%c0_5, %c1, %c0_6], %1 {strides = array<i32>} : memref<8x18x18xf32, #tpu.memory_space<vmem>>, vector<8x16x1xf32>,
    %c0_7 = arith.constant 0 : index
    %c1_8 = arith.constant 1 : index
    %c17_9 = arith.constant 17 : index
    %5 = vector.load %arg3[%c0_7, %c1_8, %c17_9] : memref<8x18x18xf32, #tpu.memory_space<vmem>>, vector<8x16x1xf32>
    tpu.vector_store %arg3[%c0_7, %c1_8, %c17_9], %1 {strides = array<i32>} : memref<8x18x18xf32, #tpu.memory_space<vmem>>, vector<8x16x1xf32>,
    %c0_10 = arith.constant 0 : index
    %c0_11 = arith.constant 0 : index
    %c0_12 = arith.constant 0 : index
    %6 = vector.load %arg1[%c0_10, %c0_11, %c0_12] : memref<8x16x16xf32, #tpu.memory_space<vmem>>, vector<8x16x16xf32>
    %c0_13 = arith.constant 0 : index
    %c1_14 = arith.constant 1 : index
    %c1_15 = arith.constant 1 : index
    %7 = vector.load %arg3[%c0_13, %c1_14, %c1_15] : memref<8x18x18xf32, #tpu.memory_space<vmem>>, vector<8x16x16xf32>
    tpu.vector_store %arg3[%c0_13, %c1_14, %c1_15], %6 {strides = array<i32>} : memref<8x18x18xf32, #tpu.memory_space<vmem>>, vector<8x16x16xf32>,
    %c0_16 = arith.constant 0 : index
    %c0_17 = arith.constant 0 : index
    %c0_18 = arith.constant 0 : index
    %8 = vector.load %arg3[%c0_16, %c0_17, %c0_18] : memref<8x18x18xf32, #tpu.memory_space<vmem>>, vector<8x16x16xf32>
    %c0_19 = arith.constant 0 : index
    %c0_20 = arith.constant 0 : index
    %c1_21 = arith.constant 1 : index
    %9 = vector.load %arg3[%c0_19, %c0_20, %c1_21] : memref<8x18x18xf32, #tpu.memory_space<vmem>>, vector<8x16x16xf32>
    %c0_22 = arith.constant 0 : index
    %c0_23 = arith.constant 0 : index
    %c2 = arith.constant 2 : index
    %10 = vector.load %arg3[%c0_22, %c0_23, %c2] : memref<8x18x18xf32, #tpu.memory_space<vmem>>, vector<8x16x16xf32>
    %c0_24 = arith.constant 0 : index
    %c1_25 = arith.constant 1 : index
    %c0_26 = arith.constant 0 : index
    %11 = vector.load %arg3[%c0_24, %c1_25, %c0_26] : memref<8x18x18xf32, #tpu.memory_space<vmem>>, vector<8x16x16xf32>
    %c0_27 = arith.constant 0 : index
    %c1_28 = arith.constant 1 : index
    %c2_29 = arith.constant 2 : index
    %12 = vector.load %arg3[%c0_27, %c1_28, %c2_29] : memref<8x18x18xf32, #tpu.memory_space<vmem>>, vector<8x16x16xf32>
    %c0_30 = arith.constant 0 : index
    %c2_31 = arith.constant 2 : index
    %c0_32 = arith.constant 0 : index
    %13 = vector.load %arg3[%c0_30, %c2_31, %c0_32] : memref<8x18x18xf32, #tpu.memory_space<vmem>>, vector<8x16x16xf32>
    %c0_33 = arith.constant 0 : index
    %c2_34 = arith.constant 2 : index
    %c1_35 = arith.constant 1 : index
    %14 = vector.load %arg3[%c0_33, %c2_34, %c1_35] : memref<8x18x18xf32, #tpu.memory_space<vmem>>, vector<8x16x16xf32>
    %c0_36 = arith.constant 0 : index
    %c2_37 = arith.constant 2 : index
    %c2_38 = arith.constant 2 : index
    %15 = vector.load %arg3[%c0_36, %c2_37, %c2_38] : memref<8x18x18xf32, #tpu.memory_space<vmem>>, vector<8x16x16xf32>
    %16 = arith.subf %8, %13 : vector<8x16x16xf32>
    %17 = arith.subf %10, %15 : vector<8x16x16xf32>
    %18 = arith.addf %16, %17 : vector<8x16x16xf32>
    %19 = arith.subf %9, %14 : vector<8x16x16xf32>
    %cst_39 = arith.constant 2.000000e+00 : f32
    %20 = vector.broadcast %cst_39 : f32 to vector<8x16x16xf32>
    %21 = arith.mulf %20, %19 : vector<8x16x16xf32>
    %22 = arith.addf %18, %21 : vector<8x16x16xf32>
    %23 = arith.subf %10, %8 : vector<8x16x16xf32>
    %24 = arith.subf %15, %13 : vector<8x16x16xf32>
    %25 = arith.addf %23, %24 : vector<8x16x16xf32>
    %26 = arith.subf %12, %11 : vector<8x16x16xf32>
    %cst_40 = arith.constant 2.000000e+00 : f32
    %27 = vector.broadcast %cst_40 : f32 to vector<8x16x16xf32>
    %28 = arith.mulf %27, %26 : vector<8x16x16xf32>
    %29 = arith.addf %25, %28 : vector<8x16x16xf32>
    %30 = arith.mulf %22, %22 : vector<8x16x16xf32>
    %31 = arith.mulf %29, %29 : vector<8x16x16xf32>
    %32 = arith.addf %30, %31 : vector<8x16x16xf32>
    %cst_41 = arith.constant 9.99999997E-7 : f32
    %33 = vector.broadcast %cst_41 : f32 to vector<8x16x16xf32>
    %34 = arith.addf %32, %33 : vector<8x16x16xf32>
    %35 = math.sqrt %34 : vector<8x16x16xf32>
    %c0_42 = arith.constant 0 : index
    %c0_43 = arith.constant 0 : index
    %c0_44 = arith.constant 0 : index
    %36 = vector.load %arg2[%c0_42, %c0_43, %c0_44] : memref<8x16x16xf32, #tpu.memory_space<vmem>>, vector<8x16x16xf32>
    tpu.vector_store %arg2[%c0_42, %c0_43, %c0_44], %35 {strides = array<i32>} : memref<8x16x16xf32, #tpu.memory_space<vmem>>, vector<8x16x16xf32>,
    return
  }
  func.func @transform_0(%arg0: i32) -> (i32, i32, i32) {
    %c0_i32 = arith.constant 0 : i32
    %c0_i32_0 = arith.constant 0 : i32
    %c0_i32_1 = arith.constant 0 : i32
    return %arg0, %c0_i32, %c0_i32_0 : i32, i32, i32
  }
  func.func @transform_1(%arg0: i32) -> (i32, i32, i32) {
    %c0_i32 = arith.constant 0 : i32
    %c0_i32_0 = arith.constant 0 : i32
    %c0_i32_1 = arith.constant 0 : i32
    return %arg0, %c0_i32, %c0_i32_0 : i32, i32, i32
  }
}

</mosaic_0001>

<llo_original>
// kernel: tpu_custom_call.1
$region0: #{tpu_custom_call.1}
  #allocation0 [shape = 'u32[]', space=smem, size = 0x4, offset = 0x4, fixed_abs, tag = 'smem constant byte address 0x4 - core index']
  #allocation1 [shape = 'u32[72,128]{1,0:T(1,128)}', space=vmem, size = 0x9000, scoped, tag = 'internal scratch']
  #allocation2 [shape = 'f32[8,18,18]{2,1,0:T(8,128)}', space=vmem, size = 0x18000, scoped, tag = 'scratch operand']
  %s0 = inlined_call_operand.hbm [shape: f32[8,16,16], index: 0, kind: input, shape index: {}]
  %s1 = inlined_call_operand.hbm [shape: f32[8,16,16], index: 1, kind: output, shape index: {}]
  %s2 = sld [smem:[#allocation0]]
  $region18: #{tpu_custom_call.1} parent=0
    _
  %s4 = ssub.s32 1, %s2
  %s5 = scalar_select 0, %s4, %s2
  $region1: #{tpu_custom_call.1} parent=0
    #allocation3 [shape = 'u8[65536]{0}', space=vmem, size = 0x10000, scoped, tag = 'input window, operand 0, single buffered']
    #allocation4 [shape = 's32[1]{0}', space=sflag, size = 0x4, scoped, tag = 'scoped memory for tpu_custom_call.1']
    #allocation5 [shape = 's32[1]{0}', space=sflag, size = 0x4, scoped, tag = 'scoped memory for tpu_custom_call.1']
    #allocation6 [shape = 'u8[65536]{0}', space=vmem, size = 0x10000, scoped, tag = 'output window, operand 0, single buffered']
    %6 = vsyncpa [#allocation4], 0
    %7 = vsyncpa [#allocation5], 0
    // Predicated region
    $region2: #{tpu_custom_call.1} parent=1 // pred_check
      _
    $region3: #{tpu_custom_call.1} parent=1 // pred_check_branch
      %9 = sbr.rel (0) target = $region5
    $region4: #{tpu_custom_call.1} parent=1 // pred_region
      %11 = vsyncadd [#allocation4], 0
      %s12 = sshll.u32 %s0, 4
      %s13 = int_to_ptr.hbm [resolvable:$true] %s12
      %s14 = sshll.u32 [#allocation3], 4
      %s15 = int_to_ptr.vmem [resolvable:$true] %s14
      %20 = dma.hbm_to_vmem [thread:$0]  %s13, 2048, %s15, [#allocation4], 128, 128, 8
    $region5: #{tpu_custom_call.1} parent=1 // pred_fallthru
      _
    // Predicated region
    $region6: #{tpu_custom_call.1} parent=1 // pred_check
      _
    $region7: #{tpu_custom_call.1} parent=1 // pred_check_branch
      %22 = sbr.rel (0) target = $region9
    $region8: #{tpu_custom_call.1} parent=1 // pred_region
      %24 = dma.done [#allocation4], 2048
    $region9: #{tpu_custom_call.1} parent=1 // pred_fallthru
      _
    %vm25 = vcmask 139264
    %26 = vst.msk [vmem:[#allocation2] sm:$0x1] %vm25, 0.0
    %27 = vst.msk [vmem:[#allocation2 + $0x18] sm:$0x1] %vm25, 0.0
    %28 = vst.msk [vmem:[#allocation2 + $0x30] sm:$0x1] %vm25, 0.0
    %29 = vst.msk [vmem:[#allocation2 + $0x48] sm:$0x1] %vm25, 0.0
    %30 = vst.msk [vmem:[#allocation2 + $0x60] sm:$0x1] %vm25, 0.0
    %31 = vst.msk [vmem:[#allocation2 + $0x78] sm:$0x1] %vm25, 0.0
    %32 = vst.msk [vmem:[#allocation2 + $0x90] sm:$0x1] %vm25, 0.0
    %33 = vst.msk [vmem:[#allocation2 + $0xa8] sm:$0x1] %vm25, 0.0
    %34 = vst.msk [vmem:[#allocation2 + $0x11] sm:$0x1] %vm25, 0.0
    %35 = vst.msk [vmem:[#allocation2 + $0x29] sm:$0x1] %vm25, 0.0
    %36 = vst.msk [vmem:[#allocation2 + $0x41] sm:$0x1] %vm25, 0.0
    %37 = vst.msk [vmem:[#allocation2 + $0x59] sm:$0x1] %vm25, 0.0
    %38 = vst.msk [vmem:[#allocation2 + $0x71] sm:$0x1] %vm25, 0.0
    %39 = vst.msk [vmem:[#allocation2 + $0x89] sm:$0x1] %vm25, 0.0
    %40 = vst.msk [vmem:[#allocation2 + $0xa1] sm:$0x1] %vm25, 0.0
    %41 = vst.msk [vmem:[#allocation2 + $0xb9] sm:$0x1] %vm25, 0.0
    %vm42 = vcmask 7168
    %43 = vst.msk [vmem:[#allocation2 + $0x1] sm:$0xff] %vm42, 0.0
    %44 = vst.msk [vmem:[#allocation2 + $0x9] sm:$0xff] %vm42, 0.0
    %45 = vst.msk [vmem:[#allocation2 + $0x19] sm:$0xff] %vm42, 0.0
    %46 = vst.msk [vmem:[#allocation2 + $0x21] sm:$0xff] %vm42, 0.0
    %47 = vst.msk [vmem:[#allocation2 + $0x31] sm:$0xff] %vm42, 0.0
    %48 = vst.msk [vmem:[#allocation2 + $0x39] sm:$0xff] %vm42, 0.0
    %49 = vst.msk [vmem:[#allocation2 + $0x49] sm:$0xff] %vm42, 0.0
    %50 = vst.msk [vmem:[#allocation2 + $0x51] sm:$0xff] %vm42, 0.0
    %51 = vst.msk [vmem:[#allocation2 + $0x61] sm:$0xff] %vm42, 0.0
    %52 = vst.msk [vmem:[#allocation2 + $0x69] sm:$0xff] %vm42, 0.0
    %53 = vst.msk [vmem:[#allocation2 + $0x79] sm:$0xff] %vm42, 0.0
    %54 = vst.msk [vmem:[#allocation2 + $0x81] sm:$0xff] %vm42, 0.0
    %55 = vst.msk [vmem:[#allocation2 + $0x91] sm:$0xff] %vm42, 0.0
    %56 = vst.msk [vmem:[#allocation2 + $0x99] sm:$0xff] %vm42, 0.0
    %57 = vst.msk [vmem:[#allocation2 + $0xa9] sm:$0xff] %vm42, 0.0
    %58 = vst.msk [vmem:[#allocation2 + $0xb1] sm:$0xff] %vm42, 0.0
    %vm59 = vcmask 146568
    %60 = vst.msk [vmem:[#allocation2 + $0x1] sm:$0xff] %vm59, 0.0
    %61 = vst.msk [vmem:[#allocation2 + $0x9] sm:$0xff] %vm59, 0.0
    %62 = vst.msk [vmem:[#allocation2 + $0x19] sm:$0xff] %vm59, 0.0
    %63 = vst.msk [vmem:[#allocation2 + $0x21] sm:$0xff] %vm59, 0.0
    %64 = vst.msk [vmem:[#allocation2 + $0x31] sm:$0xff] %vm59, 0.0
    %65 = vst.msk [vmem:[#allocation2 + $0x39] sm:$0xff] %vm59, 0.0
    %66 = vst.msk [vmem:[#allocation2 + $0x49] sm:$0xff] %vm59, 0.0
    %67 = vst.msk [vmem:[#allocation2 + $0x51] sm:$0xff] %vm59, 0.0
    %68 = vst.msk [vmem:[#allocation2 + $0x61] sm:$0xff] %vm59, 0.0
    %69 = vst.msk [vmem:[#allocation2 + $0x69] sm:$0xff] %vm59, 0.0
    %70 = vst.msk [vmem:[#allocation2 + $0x79] sm:$0xff] %vm59, 0.0
    %71 = vst.msk [vmem:[#allocation2 + $0x81] sm:$0xff] %vm59, 0.0
    %72 = vst.msk [vmem:[#allocation2 + $0x91] sm:$0xff] %vm59, 0.0
    %73 = vst.msk [vmem:[#allocation2 + $0x99] sm:$0xff] %vm59, 0.0
    %74 = vst.msk [vmem:[#allocation2 + $0xa9] sm:$0xff] %vm59, 0.0
    %75 = vst.msk [vmem:[#allocation2 + $0xb1] sm:$0xff] %vm59, 0.0
    %v76 = vld [vmem:[#allocation3] sm:$0xff]
    %v77 = vld [vmem:[#allocation3 + $0x8] sm:$0xff]
    %v78 = vld [vmem:[#allocation3 + $0x10] sm:$0xff]
    %v79 = vld [vmem:[#allocation3 + $0x18] sm:$0xff]
    %v80 = vld [vmem:[#allocation3 + $0x20] sm:$0xff]
    %v81 = vld [vmem:[#allocation3 + $0x28] sm:$0xff]
    %v82 = vld [vmem:[#allocation3 + $0x30] sm:$0xff]
    %v83 = vld [vmem:[#allocation3 + $0x38] sm:$0xff]
    %v84 = vld [vmem:[#allocation3 + $0x40] sm:$0xff]
    %v85 = vld [vmem:[#allocation3 + $0x48] sm:$0xff]
    %v86 = vld [vmem:[#allocation3 + $0x50] sm:$0xff]
    %v87 = vld [vmem:[#allocation3 + $0x58] sm:$0xff]
    %v88 = vld [vmem:[#allocation3 + $0x60] sm:$0xff]
    %v89 = vld [vmem:[#allocation3 + $0x68] sm:$0xff]
    %v90 = vld [vmem:[#allocation3 + $0x70] sm:$0xff]
    %v91 = vld [vmem:[#allocation3 + $0x78] sm:$0xff]
    %108 = vrot.lane.b32.xlu0 %v76, 1
    %v109 = vpop.permute.xlu0 %108
    %110 = vrot.lane.b32.xlu0 %v77, 1
    %v111 = vpop.permute.xlu0 %110
    %112 = vrot.lane.b32.xlu0 %v78, 1
    %v113 = vpop.permute.xlu0 %112
    %114 = vrot.lane.b32.xlu0 %v79, 1
    %v115 = vpop.permute.xlu0 %114
    %116 = vrot.lane.b32.xlu0 %v80, 1
    %v117 = vpop.permute.xlu0 %116
    %118 = vrot.lane.b32.xlu0 %v81, 1
    %v119 = vpop.permute.xlu0 %118
    %120 = vrot.lane.b32.xlu0 %v82, 1
    %v121 = vpop.permute.xlu0 %120
    %122 = vrot.lane.b32.xlu0 %v83, 1
    %v123 = vpop.permute.xlu0 %122
    %124 = vrot.lane.b32.xlu0 %v84, 1
    %v125 = vpop.permute.xlu0 %124
    %126 = vrot.lane.b32.xlu0 %v85, 1
    %v127 = vpop.permute.xlu0 %126
    %128 = vrot.lane.b32.xlu0 %v86, 1
    %v129 = vpop.permute.xlu0 %128
    %130 = vrot.lane.b32.xlu0 %v87, 1
    %v131 = vpop.permute.xlu0 %130
    %132 = vrot.lane.b32.xlu0 %v88, 1
    %v133 = vpop.permute.xlu0 %132
    %134 = vrot.lane.b32.xlu0 %v89, 1
    %v135 = vpop.permute.xlu0 %134
    %136 = vrot.lane.b32.xlu0 %v90, 1
    %v137 = vpop.permute.xlu0 %136
    %138 = vrot.lane.b32.xlu0 %v91, 1
    %v139 = vpop.permute.xlu0 %138
    %vm156 = vcmask 138248
    %157 = vst.msk [vmem:[#allocation2 + $0x1] sm:$0xff] %vm156, %v109
    %158 = vst.msk [vmem:[#allocation2 + $0x9] sm:$0xff] %vm156, %v111
    %159 = vst.msk [vmem:[#allocation2 + $0x19] sm:$0xff] %vm156, %v113
    %160 = vst.msk [vmem:[#allocation2 + $0x21] sm:$0xff] %vm156, %v115
    %161 = vst.msk [vmem:[#allocation2 + $0x31] sm:$0xff] %vm156, %v117
    %162 = vst.msk [vmem:[#allocation2 + $0x39] sm:$0xff] %vm156, %v119
    %163 = vst.msk [vmem:[#allocation2 + $0x49] sm:$0xff] %vm156, %v121
    %164 = vst.msk [vmem:[#allocation2 + $0x51] sm:$0xff] %vm156, %v123
    %165 = vst.msk [vmem:[#allocation2 + $0x61] sm:$0xff] %vm156, %v125
    %166 = vst.msk [vmem:[#allocation2 + $0x69] sm:$0xff] %vm156, %v127
    %167 = vst.msk [vmem:[#allocation2 + $0x79] sm:$0xff] %vm156, %v129
    %168 = vst.msk [vmem:[#allocation2 + $0x81] sm:$0xff] %vm156, %v131
    %169 = vst.msk [vmem:[#allocation2 + $0x91] sm:$0xff] %vm156, %v133
    %170 = vst.msk [vmem:[#allocation2 + $0x99] sm:$0xff] %vm156, %v135
    %171 = vst.msk [vmem:[#allocation2 + $0xa9] sm:$0xff] %vm156, %v137
    %172 = vst.msk [vmem:[#allocation2 + $0xb1] sm:$0xff] %vm156, %v139
    %v173 = vld [vmem:[#allocation2] sm:$0xff]
    %v174 = vld [vmem:[#allocation2 + $0x8] sm:$0xff]
    %v175 = vld [vmem:[#allocation2 + $0x18] sm:$0xff]
    %v176 = vld [vmem:[#allocation2 + $0x20] sm:$0xff]
    %v177 = vld [vmem:[#allocation2 + $0x30] sm:$0xff]
    %v178 = vld [vmem:[#allocation2 + $0x38] sm:$0xff]
    %v179 = vld [vmem:[#allocation2 + $0x48] sm:$0xff]
    %v180 = vld [vmem:[#allocation2 + $0x50] sm:$0xff]
    %v181 = vld [vmem:[#allocation2 + $0x60] sm:$0xff]
    %v182 = vld [vmem:[#allocation2 + $0x68] sm:$0xff]
    %v183 = vld [vmem:[#allocation2 + $0x78] sm:$0xff]
    %v184 = vld [vmem:[#allocation2 + $0x80] sm:$0xff]
    %v185 = vld [vmem:[#allocation2 + $0x90] sm:$0xff]
    %v186 = vld [vmem:[#allocation2 + $0x98] sm:$0xff]
    %v187 = vld [vmem:[#allocation2 + $0xa8] sm:$0xff]
    %v188 = vld [vmem:[#allocation2 + $0xb0] sm:$0xff]
    %v189 = vld [vmem:[#allocation2 + $0x1] sm:$0xff]
    %v190 = vld [vmem:[#allocation2 + $0x9] sm:$0xff]
    %v191 = vld [vmem:[#allocation2 + $0x19] sm:$0xff]
    %v192 = vld [vmem:[#allocation2 + $0x21] sm:$0xff]
    %v193 = vld [vmem:[#allocation2 + $0x31] sm:$0xff]
    %v194 = vld [vmem:[#allocation2 + $0x39] sm:$0xff]
    %v195 = vld [vmem:[#allocation2 + $0x49] sm:$0xff]
    %v196 = vld [vmem:[#allocation2 + $0x51] sm:$0xff]
    %v197 = vld [vmem:[#allocation2 + $0x61] sm:$0xff]
    %v198 = vld [vmem:[#allocation2 + $0x69] sm:$0xff]
    %v199 = vld [vmem:[#allocation2 + $0x79] sm:$0xff]
    %v200 = vld [vmem:[#allocation2 + $0x81] sm:$0xff]
    %v201 = vld [vmem:[#allocation2 + $0x91] sm:$0xff]
    %v202 = vld [vmem:[#allocation2 + $0x99] sm:$0xff]
    %v203 = vld [vmem:[#allocation2 + $0xa9] sm:$0xff]
    %v204 = vld [vmem:[#allocation2 + $0xb1] sm:$0xff]
    %v205 = vld [vmem:[#allocation2 + $0x2] sm:$0xff]
    %v206 = vld [vmem:[#allocation2 + $0xa] sm:$0xff]
    %v207 = vld [vmem:[#allocation2 + $0x1a] sm:$0xff]
    %v208 = vld [vmem:[#allocation2 + $0x22] sm:$0xff]
    %v209 = vld [vmem:[#allocation2 + $0x32] sm:$0xff]
    %v210 = vld [vmem:[#allocation2 + $0x3a] sm:$0xff]
    %v211 = vld [vmem:[#allocation2 + $0x4a] sm:$0xff]
    %v212 = vld [vmem:[#allocation2 + $0x52] sm:$0xff]
    %v213 = vld [vmem:[#allocation2 + $0x62] sm:$0xff]
    %v214 = vld [vmem:[#allocation2 + $0x6a] sm:$0xff]
    %v215 = vld [vmem:[#allocation2 + $0x7a] sm:$0xff]
    %v216 = vld [vmem:[#allocation2 + $0x82] sm:$0xff]
    %v217 = vld [vmem:[#allocation2 + $0x92] sm:$0xff]
    %v218 = vld [vmem:[#allocation2 + $0x9a] sm:$0xff]
    %v219 = vld [vmem:[#allocation2 + $0xaa] sm:$0xff]
    %v220 = vld [vmem:[#allocation2 + $0xb2] sm:$0xff]
    %v221 = vsub.f32 %v173, %v205
    %v222 = vsub.f32 %v174, %v206
    %v223 = vsub.f32 %v175, %v207
    %v224 = vsub.f32 %v176, %v208
    %v225 = vsub.f32 %v177, %v209
    %v226 = vsub.f32 %v178, %v210
    %v227 = vsub.f32 %v179, %v211
    %v228 = vsub.f32 %v180, %v212
    %v229 = vsub.f32 %v181, %v213
    %v230 = vsub.f32 %v182, %v214
    %v231 = vsub.f32 %v183, %v215
    %v232 = vsub.f32 %v184, %v216
    %v233 = vsub.f32 %v185, %v217
    %v234 = vsub.f32 %v186, %v218
    %v235 = vsub.f32 %v187, %v219
    %v236 = vsub.f32 %v188, %v220
    %253 = vrot.lane.b32.xlu0 %v221, 126
    %v254 = vpop.permute.xlu0 %253
    %255 = vrot.lane.b32.xlu0 %v222, 126
    %v256 = vpop.permute.xlu0 %255
    %257 = vrot.lane.b32.xlu0 %v223, 126
    %v258 = vpop.permute.xlu0 %257
    %259 = vrot.lane.b32.xlu0 %v224, 126
    %v260 = vpop.permute.xlu0 %259
    %261 = vrot.lane.b32.xlu0 %v225, 126
    %v262 = vpop.permute.xlu0 %261
    %263 = vrot.lane.b32.xlu0 %v226, 126
    %v264 = vpop.permute.xlu0 %263
    %265 = vrot.lane.b32.xlu0 %v227, 126
    %v266 = vpop.permute.xlu0 %265
    %267 = vrot.lane.b32.xlu0 %v228, 126
    %v268 = vpop.permute.xlu0 %267
    %269 = vrot.lane.b32.xlu0 %v229, 126
    %v270 = vpop.permute.xlu0 %269
    %271 = vrot.lane.b32.xlu0 %v230, 126
    %v272 = vpop.permute.xlu0 %271
    %273 = vrot.lane.b32.xlu0 %v231, 126
    %v274 = vpop.permute.xlu0 %273
    %275 = vrot.lane.b32.xlu0 %v232, 126
    %v276 = vpop.permute.xlu0 %275
    %277 = vrot.lane.b32.xlu0 %v233, 126
    %v278 = vpop.permute.xlu0 %277
    %279 = vrot.lane.b32.xlu0 %v234, 126
    %v280 = vpop.permute.xlu0 %279
    %281 = vrot.lane.b32.xlu0 %v235, 126
    %v282 = vpop.permute.xlu0 %281
    %283 = vrot.lane.b32.xlu0 %v236, 126
    %v284 = vpop.permute.xlu0 %283
    %v301 = vadd.f32 %v221, %v254
    %v302 = vadd.f32 %v222, %v256
    %v303 = vadd.f32 %v223, %v258
    %v304 = vadd.f32 %v224, %v260
    %v305 = vadd.f32 %v225, %v262
    %v306 = vadd.f32 %v226, %v264
    %v307 = vadd.f32 %v227, %v266
    %v308 = vadd.f32 %v228, %v268
    %v309 = vadd.f32 %v229, %v270
    %v310 = vadd.f32 %v230, %v272
    %v311 = vadd.f32 %v231, %v274
    %v312 = vadd.f32 %v232, %v276
    %v313 = vadd.f32 %v233, %v278
    %v314 = vadd.f32 %v234, %v280
    %v315 = vadd.f32 %v235, %v282
    %v316 = vadd.f32 %v236, %v284
    %v317 = vmul.f32 %v221, 2.0
    %v318 = vmul.f32 %v222, 2.0
    %v319 = vmul.f32 %v223, 2.0
    %v320 = vmul.f32 %v224, 2.0
    %v321 = vmul.f32 %v225, 2.0
    %v322 = vmul.f32 %v226, 2.0
    %v323 = vmul.f32 %v227, 2.0
    %v324 = vmul.f32 %v228, 2.0
    %v325 = vmul.f32 %v229, 2.0
    %v326 = vmul.f32 %v230, 2.0
    %v327 = vmul.f32 %v231, 2.0
    %v328 = vmul.f32 %v232, 2.0
    %v329 = vmul.f32 %v233, 2.0
    %v330 = vmul.f32 %v234, 2.0
    %v331 = vmul.f32 %v235, 2.0
    %v332 = vmul.f32 %v236, 2.0
    %349 = vrot.lane.b32.xlu0 %v317, 127
    %v350 = vpop.permute.xlu0 %349
    %351 = vrot.lane.b32.xlu0 %v318, 127
    %v352 = vpop.permute.xlu0 %351
    %353 = vrot.lane.b32.xlu0 %v319, 127
    %v354 = vpop.permute.xlu0 %353
    %355 = vrot.lane.b32.xlu0 %v320, 127
    %v356 = vpop.permute.xlu0 %355
    %357 = vrot.lane.b32.xlu0 %v321, 127
    %v358 = vpop.permute.xlu0 %357
    %359 = vrot.lane.b32.xlu0 %v322, 127
    %v360 = vpop.permute.xlu0 %359
    %361 = vrot.lane.b32.xlu0 %v323, 127
    %v362 = vpop.permute.xlu0 %361
    %363 = vrot.lane.b32.xlu0 %v324, 127
    %v364 = vpop.permute.xlu0 %363
    %365 = vrot.lane.b32.xlu0 %v325, 127
    %v366 = vpop.permute.xlu0 %365
    %367 = vrot.lane.b32.xlu0 %v326, 127
    %v368 = vpop.permute.xlu0 %367
    %369 = vrot.lane.b32.xlu0 %v327, 127
    %v370 = vpop.permute.xlu0 %369
    %371 = vrot.lane.b32.xlu0 %v328, 127
    %v372 = vpop.permute.xlu0 %371
    %373 = vrot.lane.b32.xlu0 %v329, 127
    %v374 = vpop.permute.xlu0 %373
    %375 = vrot.lane.b32.xlu0 %v330, 127
    %v376 = vpop.permute.xlu0 %375
    %377 = vrot.lane.b32.xlu0 %v331, 127
    %v378 = vpop.permute.xlu0 %377
    %379 = vrot.lane.b32.xlu0 %v332, 127
    %v380 = vpop.permute.xlu0 %379
    %v397 = vadd.f32 %v301, %v350
    %v398 = vadd.f32 %v302, %v352
    %v399 = vadd.f32 %v303, %v354
    %v400 = vadd.f32 %v304, %v356
    %v401 = vadd.f32 %v305, %v358
    %v402 = vadd.f32 %v306, %v360
    %v403 = vadd.f32 %v307, %v362
    %v404 = vadd.f32 %v308, %v364
    %v405 = vadd.f32 %v309, %v366
    %v406 = vadd.f32 %v310, %v368
    %v407 = vadd.f32 %v311, %v370
    %v408 = vadd.f32 %v312, %v372
    %v409 = vadd.f32 %v313, %v374
    %v410 = vadd.f32 %v314, %v376
    %v411 = vadd.f32 %v315, %v378
    %v412 = vadd.f32 %v316, %v380
    %429 = vrot.lane.b32.xlu0 %v173, 2
    %v430 = vpop.permute.xlu0 %429
    %431 = vrot.lane.b32.xlu0 %v174, 2
    %v432 = vpop.permute.xlu0 %431
    %433 = vrot.lane.b32.xlu0 %v175, 2
    %v434 = vpop.permute.xlu0 %433
    %435 = vrot.lane.b32.xlu0 %v176, 2
    %v436 = vpop.permute.xlu0 %435
    %437 = vrot.lane.b32.xlu0 %v177, 2
    %v438 = vpop.permute.xlu0 %437
    %439 = vrot.lane.b32.xlu0 %v178, 2
    %v440 = vpop.permute.xlu0 %439
    %441 = vrot.lane.b32.xlu0 %v179, 2
    %v442 = vpop.permute.xlu0 %441
    %443 = vrot.lane.b32.xlu0 %v180, 2
    %v444 = vpop.permute.xlu0 %443
    %445 = vrot.lane.b32.xlu0 %v181, 2
    %v446 = vpop.permute.xlu0 %445
    %447 = vrot.lane.b32.xlu0 %v182, 2
    %v448 = vpop.permute.xlu0 %447
    %449 = vrot.lane.b32.xlu0 %v183, 2
    %v450 = vpop.permute.xlu0 %449
    %451 = vrot.lane.b32.xlu0 %v184, 2
    %v452 = vpop.permute.xlu0 %451
    %453 = vrot.lane.b32.xlu0 %v185, 2
    %v454 = vpop.permute.xlu0 %453
    %455 = vrot.lane.b32.xlu0 %v186, 2
    %v456 = vpop.permute.xlu0 %455
    %457 = vrot.lane.b32.xlu0 %v187, 2
    %v458 = vpop.permute.xlu0 %457
    %459 = vrot.lane.b32.xlu0 %v188, 2
    %v460 = vpop.permute.xlu0 %459
    %v477 = vsub.f32 %v173, %v430
    %v478 = vsub.f32 %v174, %v432
    %v479 = vsub.f32 %v175, %v434
    %v480 = vsub.f32 %v176, %v436
    %v481 = vsub.f32 %v177, %v438
    %v482 = vsub.f32 %v178, %v440
    %v483 = vsub.f32 %v179, %v442
    %v484 = vsub.f32 %v180, %v444
    %v485 = vsub.f32 %v181, %v446
    %v486 = vsub.f32 %v182, %v448
    %v487 = vsub.f32 %v183, %v450
    %v488 = vsub.f32 %v184, %v452
    %v489 = vsub.f32 %v185, %v454
    %v490 = vsub.f32 %v186, %v456
    %v491 = vsub.f32 %v187, %v458
    %v492 = vsub.f32 %v188, %v460
    %509 = vrot.lane.b32.xlu0 %v205, 2
    %v510 = vpop.permute.xlu0 %509
    %511 = vrot.lane.b32.xlu0 %v206, 2
    %v512 = vpop.permute.xlu0 %511
    %513 = vrot.lane.b32.xlu0 %v207, 2
    %v514 = vpop.permute.xlu0 %513
    %515 = vrot.lane.b32.xlu0 %v208, 2
    %v516 = vpop.permute.xlu0 %515
    %517 = vrot.lane.b32.xlu0 %v209, 2
    %v518 = vpop.permute.xlu0 %517
    %519 = vrot.lane.b32.xlu0 %v210, 2
    %v520 = vpop.permute.xlu0 %519
    %521 = vrot.lane.b32.xlu0 %v211, 2
    %v522 = vpop.permute.xlu0 %521
    %523 = vrot.lane.b32.xlu0 %v212, 2
    %v524 = vpop.permute.xlu0 %523
    %525 = vrot.lane.b32.xlu0 %v213, 2
    %v526 = vpop.permute.xlu0 %525
    %527 = vrot.lane.b32.xlu0 %v214, 2
    %v528 = vpop.permute.xlu0 %527
    %529 = vrot.lane.b32.xlu0 %v215, 2
    %v530 = vpop.permute.xlu0 %529
    %531 = vrot.lane.b32.xlu0 %v216, 2
    %v532 = vpop.permute.xlu0 %531
    %533 = vrot.lane.b32.xlu0 %v217, 2
    %v534 = vpop.permute.xlu0 %533
    %535 = vrot.lane.b32.xlu0 %v218, 2
    %v536 = vpop.permute.xlu0 %535
    %537 = vrot.lane.b32.xlu0 %v219, 2
    %v538 = vpop.permute.xlu0 %537
    %539 = vrot.lane.b32.xlu0 %v220, 2
    %v540 = vpop.permute.xlu0 %539
    %v557 = vsub.f32 %v205, %v510
    %v558 = vsub.f32 %v206, %v512
    %v559 = vsub.f32 %v207, %v514
    %v560 = vsub.f32 %v208, %v516
    %v561 = vsub.f32 %v209, %v518
    %v562 = vsub.f32 %v210, %v520
    %v563 = vsub.f32 %v211, %v522
    %v564 = vsub.f32 %v212, %v524
    %v565 = vsub.f32 %v213, %v526
    %v566 = vsub.f32 %v214, %v528
    %v567 = vsub.f32 %v215, %v530
    %v568 = vsub.f32 %v216, %v532
    %v569 = vsub.f32 %v217, %v534
    %v570 = vsub.f32 %v218, %v536
    %v571 = vsub.f32 %v219, %v538
    %v572 = vsub.f32 %v220, %v540
    %v573 = vadd.f32 %v477, %v557
    %v574 = vadd.f32 %v478, %v558
    %v575 = vadd.f32 %v479, %v559
    %v576 = vadd.f32 %v480, %v560
    %v577 = vadd.f32 %v481, %v561
    %v578 = vadd.f32 %v482, %v562
    %v579 = vadd.f32 %v483, %v563
    %v580 = vadd.f32 %v484, %v564
    %v581 = vadd.f32 %v485, %v565
    %v582 = vadd.f32 %v486, %v566
    %v583 = vadd.f32 %v487, %v567
    %v584 = vadd.f32 %v488, %v568
    %v585 = vadd.f32 %v489, %v569
    %v586 = vadd.f32 %v490, %v570
    %v587 = vadd.f32 %v491, %v571
    %v588 = vadd.f32 %v492, %v572
    %605 = vrot.lane.b32.xlu0 %v189, 2
    %v606 = vpop.permute.xlu0 %605
    %607 = vrot.lane.b32.xlu0 %v190, 2
    %v608 = vpop.permute.xlu0 %607
    %609 = vrot.lane.b32.xlu0 %v191, 2
    %v610 = vpop.permute.xlu0 %609
    %611 = vrot.lane.b32.xlu0 %v192, 2
    %v612 = vpop.permute.xlu0 %611
    %613 = vrot.lane.b32.xlu0 %v193, 2
    %v614 = vpop.permute.xlu0 %613
    %615 = vrot.lane.b32.xlu0 %v194, 2
    %v616 = vpop.permute.xlu0 %615
    %617 = vrot.lane.b32.xlu0 %v195, 2
    %v618 = vpop.permute.xlu0 %617
    %619 = vrot.lane.b32.xlu0 %v196, 2
    %v620 = vpop.permute.xlu0 %619
    %621 = vrot.lane.b32.xlu0 %v197, 2
    %v622 = vpop.permute.xlu0 %621
    %623 = vrot.lane.b32.xlu0 %v198, 2
    %v624 = vpop.permute.xlu0 %623
    %625 = vrot.lane.b32.xlu0 %v199, 2
    %v626 = vpop.permute.xlu0 %625
    %627 = vrot.lane.b32.xlu0 %v200, 2
    %v628 = vpop.permute.xlu0 %627
    %629 = vrot.lane.b32.xlu0 %v201, 2
    %v630 = vpop.permute.xlu0 %629
    %631 = vrot.lane.b32.xlu0 %v202, 2
    %v632 = vpop.permute.xlu0 %631
    %633 = vrot.lane.b32.xlu0 %v203, 2
    %v634 = vpop.permute.xlu0 %633
    %635 = vrot.lane.b32.xlu0 %v204, 2
    %v636 = vpop.permute.xlu0 %635
    %v653 = vsub.f32 %v189, %v606
    %v654 = vsub.f32 %v190, %v608
    %v655 = vsub.f32 %v191, %v610
    %v656 = vsub.f32 %v192, %v612
    %v657 = vsub.f32 %v193, %v614
    %v658 = vsub.f32 %v194, %v616
    %v659 = vsub.f32 %v195, %v618
    %v660 = vsub.f32 %v196, %v620
    %v661 = vsub.f32 %v197, %v622
    %v662 = vsub.f32 %v198, %v624
    %v663 = vsub.f32 %v199, %v626
    %v664 = vsub.f32 %v200, %v628
    %v665 = vsub.f32 %v201, %v630
    %v666 = vsub.f32 %v202, %v632
    %v667 = vsub.f32 %v203, %v634
    %v668 = vsub.f32 %v204, %v636
    %v669 = vmul.f32 %v653, 2.0
    %v670 = vmul.f32 %v654, 2.0
    %v671 = vmul.f32 %v655, 2.0
    %v672 = vmul.f32 %v656, 2.0
    %v673 = vmul.f32 %v657, 2.0
    %v674 = vmul.f32 %v658, 2.0
    %v675 = vmul.f32 %v659, 2.0
    %v676 = vmul.f32 %v660, 2.0
    %v677 = vmul.f32 %v661, 2.0
    %v678 = vmul.f32 %v662, 2.0
    %v679 = vmul.f32 %v663, 2.0
    %v680 = vmul.f32 %v664, 2.0
    %v681 = vmul.f32 %v665, 2.0
    %v682 = vmul.f32 %v666, 2.0
    %v683 = vmul.f32 %v667, 2.0
    %v684 = vmul.f32 %v668, 2.0
    %v685 = vadd.f32 %v573, %v669
    %v686 = vadd.f32 %v574, %v670
    %v687 = vadd.f32 %v575, %v671
    %v688 = vadd.f32 %v576, %v672
    %v689 = vadd.f32 %v577, %v673
    %v690 = vadd.f32 %v578, %v674
    %v691 = vadd.f32 %v579, %v675
    %v692 = vadd.f32 %v580, %v676
    %v693 = vadd.f32 %v581, %v677
    %v694 = vadd.f32 %v582, %v678
    %v695 = vadd.f32 %v583, %v679
    %v696 = vadd.f32 %v584, %v680
    %v697 = vadd.f32 %v585, %v681
    %v698 = vadd.f32 %v586, %v682
    %v699 = vadd.f32 %v587, %v683
    %v700 = vadd.f32 %v588, %v684
    %v701 = vmul.f32 %v397, %v397
    %v702 = vmul.f32 %v398, %v398
    %v703 = vmul.f32 %v399, %v399
    %v704 = vmul.f32 %v400, %v400
    %v705 = vmul.f32 %v401, %v401
    %v706 = vmul.f32 %v402, %v402
    %v707 = vmul.f32 %v403, %v403
    %v708 = vmul.f32 %v404, %v404
    %v709 = vmul.f32 %v405, %v405
    %v710 = vmul.f32 %v406, %v406
    %v711 = vmul.f32 %v407, %v407
    %v712 = vmul.f32 %v408, %v408
    %v713 = vmul.f32 %v409, %v409
    %v714 = vmul.f32 %v410, %v410
    %v715 = vmul.f32 %v411, %v411
    %v716 = vmul.f32 %v412, %v412
    %v717 = vmul.f32 %v685, %v685
    %v718 = vmul.f32 %v686, %v686
    %v719 = vmul.f32 %v687, %v687
    %v720 = vmul.f32 %v688, %v688
    %v721 = vmul.f32 %v689, %v689
    %v722 = vmul.f32 %v690, %v690
    %v723 = vmul.f32 %v691, %v691
    %v724 = vmul.f32 %v692, %v692
    %v725 = vmul.f32 %v693, %v693
    %v726 = vmul.f32 %v694, %v694
    %v727 = vmul.f32 %v695, %v695
    %v728 = vmul.f32 %v696, %v696
    %v729 = vmul.f32 %v697, %v697
    %v730 = vmul.f32 %v698, %v698
    %v731 = vmul.f32 %v699, %v699
    %v732 = vmul.f32 %v700, %v700
    %749 = vrot.lane.b32.xlu0 %v717, 126
    %v750 = vpop.permute.xlu0 %749
    %751 = vrot.lane.b32.xlu0 %v718, 126
    %v752 = vpop.permute.xlu0 %751
    %753 = vrot.lane.b32.xlu0 %v719, 126
    %v754 = vpop.permute.xlu0 %753
    %755 = vrot.lane.b32.xlu0 %v720, 126
    %v756 = vpop.permute.xlu0 %755
    %757 = vrot.lane.b32.xlu0 %v721, 126
    %v758 = vpop.permute.xlu0 %757
    %759 = vrot.lane.b32.xlu0 %v722, 126
    %v760 = vpop.permute.xlu0 %759
    %761 = vrot.lane.b32.xlu0 %v723, 126
    %v762 = vpop.permute.xlu0 %761
    %763 = vrot.lane.b32.xlu0 %v724, 126
    %v764 = vpop.permute.xlu0 %763
    %765 = vrot.lane.b32.xlu0 %v725, 126
    %v766 = vpop.permute.xlu0 %765
    %767 = vrot.lane.b32.xlu0 %v726, 126
    %v768 = vpop.permute.xlu0 %767
    %769 = vrot.lane.b32.xlu0 %v727, 126
    %v770 = vpop.permute.xlu0 %769
    %771 = vrot.lane.b32.xlu0 %v728, 126
    %v772 = vpop.permute.xlu0 %771
    %773 = vrot.lane.b32.xlu0 %v729, 126
    %v774 = vpop.permute.xlu0 %773
    %775 = vrot.lane.b32.xlu0 %v730, 126
    %v776 = vpop.permute.xlu0 %775
    %777 = vrot.lane.b32.xlu0 %v731, 126
    %v778 = vpop.permute.xlu0 %777
    %779 = vrot.lane.b32.xlu0 %v732, 126
    %v780 = vpop.permute.xlu0 %779
    %v797 = vadd.f32 %v701, %v750
    %v798 = vadd.f32 %v702, %v752
    %v799 = vadd.f32 %v703, %v754
    %v800 = vadd.f32 %v704, %v756
    %v801 = vadd.f32 %v705, %v758
    %v802 = vadd.f32 %v706, %v760
    %v803 = vadd.f32 %v707, %v762
    %v804 = vadd.f32 %v708, %v764
    %v805 = vadd.f32 %v709, %v766
    %v806 = vadd.f32 %v710, %v768
    %v807 = vadd.f32 %v711, %v770
    %v808 = vadd.f32 %v712, %v772
    %v809 = vadd.f32 %v713, %v774
    %v810 = vadd.f32 %v714, %v776
    %v811 = vadd.f32 %v715, %v778
    %v812 = vadd.f32 %v716, %v780
    %v813 = vadd.f32 %v797, 1e-06
    %v814 = vadd.f32 %v798, 1e-06
    %v815 = vadd.f32 %v799, 1e-06
    %v816 = vadd.f32 %v800, 1e-06
    %v817 = vadd.f32 %v801, 1e-06
    %v818 = vadd.f32 %v802, 1e-06
    %v819 = vadd.f32 %v803, 1e-06
    %v820 = vadd.f32 %v804, 1e-06
    %v821 = vadd.f32 %v805, 1e-06
    %v822 = vadd.f32 %v806, 1e-06
    %v823 = vadd.f32 %v807, 1e-06
    %v824 = vadd.f32 %v808, 1e-06
    %v825 = vadd.f32 %v809, 1e-06
    %v826 = vadd.f32 %v810, 1e-06
    %v827 = vadd.f32 %v811, 1e-06
    %v828 = vadd.f32 %v812, 1e-06
    %v829 = vrsqrt.pop %v813
    %v830 = vmul.f32 %v829, %v813
    %v831 = vmul.f32 %v830, %v829
    %v832 = vmul.f32 0.5, %v831
    %v833 = vsub.f32 1.5, %v832
    %v834 = vmul.f32 %v829, %v833
    %v835 = vmul.f32 %v813, %v834
    %vm836 = vcmp.eq.f32.partialorder %v813, inf
    %v837 = vsel %vm836, %v813, %v835
    %vm838 = vcmp.eq.f32.partialorder %v813, 0.0
    %v839 = vand.u32 %v813, 2147483648
    %v840 = vsel %vm838, %v839, %v837
    %v841 = vrsqrt.pop %v814
    %v842 = vmul.f32 %v841, %v814
    %v843 = vmul.f32 %v842, %v841
    %v844 = vmul.f32 0.5, %v843
    %v845 = vsub.f32 1.5, %v844
    %v846 = vmul.f32 %v841, %v845
    %v847 = vmul.f32 %v814, %v846
    %vm848 = vcmp.eq.f32.partialorder %v814, inf
    %v849 = vsel %vm848, %v814, %v847
    %vm850 = vcmp.eq.f32.partialorder %v814, 0.0
    %v851 = vand.u32 %v814, 2147483648
    %v852 = vsel %vm850, %v851, %v849
    %v853 = vrsqrt.pop %v815
    %v854 = vmul.f32 %v853, %v815
    %v855 = vmul.f32 %v854, %v853
    %v856 = vmul.f32 0.5, %v855
    %v857 = vsub.f32 1.5, %v856
    %v858 = vmul.f32 %v853, %v857
    %v859 = vmul.f32 %v815, %v858
    %vm860 = vcmp.eq.f32.partialorder %v815, inf
    %v861 = vsel %vm860, %v815, %v859
    %vm862 = vcmp.eq.f32.partialorder %v815, 0.0
    %v863 = vand.u32 %v815, 2147483648
    %v864 = vsel %vm862, %v863, %v861
    %v865 = vrsqrt.pop %v816
    %v866 = vmul.f32 %v865, %v816
    %v867 = vmul.f32 %v866, %v865
    %v868 = vmul.f32 0.5, %v867
    %v869 = vsub.f32 1.5, %v868
    %v870 = vmul.f32 %v865, %v869
    %v871 = vmul.f32 %v816, %v870
    %vm872 = vcmp.eq.f32.partialorder %v816, inf
    %v873 = vsel %vm872, %v816, %v871
    %vm874 = vcmp.eq.f32.partialorder %v816, 0.0
    %v875 = vand.u32 %v816, 2147483648
    %v876 = vsel %vm874, %v875, %v873
    %v877 = vrsqrt.pop %v817
    %v878 = vmul.f32 %v877, %v817
    %v879 = vmul.f32 %v878, %v877
    %v880 = vmul.f32 0.5, %v879
    %v881 = vsub.f32 1.5, %v880
    %v882 = vmul.f32 %v877, %v881
    %v883 = vmul.f32 %v817, %v882
    %vm884 = vcmp.eq.f32.partialorder %v817, inf
    %v885 = vsel %vm884, %v817, %v883
    %vm886 = vcmp.eq.f32.partialorder %v817, 0.0
    %v887 = vand.u32 %v817, 2147483648
    %v888 = vsel %vm886, %v887, %v885
    %v889 = vrsqrt.pop %v818
    %v890 = vmul.f32 %v889, %v818
    %v891 = vmul.f32 %v890, %v889
    %v892 = vmul.f32 0.5, %v891
    %v893 = vsub.f32 1.5, %v892
    %v894 = vmul.f32 %v889, %v893
    %v895 = vmul.f32 %v818, %v894
    %vm896 = vcmp.eq.f32.partialorder %v818, inf
    %v897 = vsel %vm896, %v818, %v895
    %vm898 = vcmp.eq.f32.partialorder %v818, 0.0
    %v899 = vand.u32 %v818, 2147483648
    %v900 = vsel %vm898, %v899, %v897
    %v901 = vrsqrt.pop %v819
    %v902 = vmul.f32 %v901, %v819
    %v903 = vmul.f32 %v902, %v901
    %v904 = vmul.f32 0.5, %v903
    %v905 = vsub.f32 1.5, %v904
    %v906 = vmul.f32 %v901, %v905
    %v907 = vmul.f32 %v819, %v906
    %vm908 = vcmp.eq.f32.partialorder %v819, inf
    %v909 = vsel %vm908, %v819, %v907
    %vm910 = vcmp.eq.f32.partialorder %v819, 0.0
    %v911 = vand.u32 %v819, 2147483648
    %v912 = vsel %vm910, %v911, %v909
    %v913 = vrsqrt.pop %v820
    %v914 = vmul.f32 %v913, %v820
    %v915 = vmul.f32 %v914, %v913
    %v916 = vmul.f32 0.5, %v915
    %v917 = vsub.f32 1.5, %v916
    %v918 = vmul.f32 %v913, %v917
    %v919 = vmul.f32 %v820, %v918
    %vm920 = vcmp.eq.f32.partialorder %v820, inf
    %v921 = vsel %vm920, %v820, %v919
    %vm922 = vcmp.eq.f32.partialorder %v820, 0.0
    %v923 = vand.u32 %v820, 2147483648
    %v924 = vsel %vm922, %v923, %v921
    %v925 = vrsqrt.pop %v821
    %v926 = vmul.f32 %v925, %v821
    %v927 = vmul.f32 %v926, %v925
    %v928 = vmul.f32 0.5, %v927
    %v929 = vsub.f32 1.5, %v928
    %v930 = vmul.f32 %v925, %v929
    %v931 = vmul.f32 %v821, %v930
    %vm932 = vcmp.eq.f32.partialorder %v821, inf
    %v933 = vsel %vm932, %v821, %v931
    %vm934 = vcmp.eq.f32.partialorder %v821, 0.0
    %v935 = vand.u32 %v821, 2147483648
    %v936 = vsel %vm934, %v935, %v933
    %v937 = vrsqrt.pop %v822
    %v938 = vmul.f32 %v937, %v822
    %v939 = vmul.f32 %v938, %v937
    %v940 = vmul.f32 0.5, %v939
    %v941 = vsub.f32 1.5, %v940
    %v942 = vmul.f32 %v937, %v941
    %v943 = vmul.f32 %v822, %v942
    %vm944 = vcmp.eq.f32.partialorder %v822, inf
    %v945 = vsel %vm944, %v822, %v943
    %vm946 = vcmp.eq.f32.partialorder %v822, 0.0
    %v947 = vand.u32 %v822, 2147483648
    %v948 = vsel %vm946, %v947, %v945
    %v949 = vrsqrt.pop %v823
    %v950 = vmul.f32 %v949, %v823
    %v951 = vmul.f32 %v950, %v949
    %v952 = vmul.f32 0.5, %v951
    %v953 = vsub.f32 1.5, %v952
    %v954 = vmul.f32 %v949, %v953
    %v955 = vmul.f32 %v823, %v954
    %vm956 = vcmp.eq.f32.partialorder %v823, inf
    %v957 = vsel %vm956, %v823, %v955
    %vm958 = vcmp.eq.f32.partialorder %v823, 0.0
    %v959 = vand.u32 %v823, 2147483648
    %v960 = vsel %vm958, %v959, %v957
    %v961 = vrsqrt.pop %v824
    %v962 = vmul.f32 %v961, %v824
    %v963 = vmul.f32 %v962, %v961
    %v964 = vmul.f32 0.5, %v963
    %v965 = vsub.f32 1.5, %v964
    %v966 = vmul.f32 %v961, %v965
    %v967 = vmul.f32 %v824, %v966
    %vm968 = vcmp.eq.f32.partialorder %v824, inf
    %v969 = vsel %vm968, %v824, %v967
    %vm970 = vcmp.eq.f32.partialorder %v824, 0.0
    %v971 = vand.u32 %v824, 2147483648
    %v972 = vsel %vm970, %v971, %v969
    %v973 = vrsqrt.pop %v825
    %v974 = vmul.f32 %v973, %v825
    %v975 = vmul.f32 %v974, %v973
    %v976 = vmul.f32 0.5, %v975
    %v977 = vsub.f32 1.5, %v976
    %v978 = vmul.f32 %v973, %v977
    %v979 = vmul.f32 %v825, %v978
    %vm980 = vcmp.eq.f32.partialorder %v825, inf
    %v981 = vsel %vm980, %v825, %v979
    %vm982 = vcmp.eq.f32.partialorder %v825, 0.0
    %v983 = vand.u32 %v825, 2147483648
    %v984 = vsel %vm982, %v983, %v981
    %v985 = vrsqrt.pop %v826
    %v986 = vmul.f32 %v985, %v826
    %v987 = vmul.f32 %v986, %v985
    %v988 = vmul.f32 0.5, %v987
    %v989 = vsub.f32 1.5, %v988
    %v990 = vmul.f32 %v985, %v989
    %v991 = vmul.f32 %v826, %v990
    %vm992 = vcmp.eq.f32.partialorder %v826, inf
    %v993 = vsel %vm992, %v826, %v991
    %vm994 = vcmp.eq.f32.partialorder %v826, 0.0
    %v995 = vand.u32 %v826, 2147483648
    %v996 = vsel %vm994, %v995, %v993
    %v997 = vrsqrt.pop %v827
    %v998 = vmul.f32 %v997, %v827
    %v999 = vmul.f32 %v998, %v997
    %v1000 = vmul.f32 0.5, %v999
    %v1001 = vsub.f32 1.5, %v1000
    %v1002 = vmul.f32 %v997, %v1001
    %v1003 = vmul.f32 %v827, %v1002
    %vm1004 = vcmp.eq.f32.partialorder %v827, inf
    %v1005 = vsel %vm1004, %v827, %v1003
    %vm1006 = vcmp.eq.f32.partialorder %v827, 0.0
    %v1007 = vand.u32 %v827, 2147483648
    %v1008 = vsel %vm1006, %v1007, %v1005
    %v1009 = vrsqrt.pop %v828
    %v1010 = vmul.f32 %v1009, %v828
    %v1011 = vmul.f32 %v1010, %v1009
    %v1012 = vmul.f32 0.5, %v1011
    %v1013 = vsub.f32 1.5, %v1012
    %v1014 = vmul.f32 %v1009, %v1013
    %v1015 = vmul.f32 %v828, %v1014
    %vm1016 = vcmp.eq.f32.partialorder %v828, inf
    %v1017 = vsel %vm1016, %v828, %v1015
    %vm1018 = vcmp.eq.f32.partialorder %v828, 0.0
    %v1019 = vand.u32 %v828, 2147483648
    %v1020 = vsel %vm1018, %v1019, %v1017
    %vm1021 = vcmask 130048
    %1022 = vst.msk [vmem:[#allocation6] sm:$0xff] %vm1021, %v840
    %1023 = vst.msk [vmem:[#allocation6 + $0x8] sm:$0xff] %vm1021, %v852
    %1024 = vst.msk [vmem:[#allocation6 + $0x10] sm:$0xff] %vm1021, %v864
    %1025 = vst.msk [vmem:[#allocation6 + $0x18] sm:$0xff] %vm1021, %v876
    %1026 = vst.msk [vmem:[#allocation6 + $0x20] sm:$0xff] %vm1021, %v888
    %1027 = vst.msk [vmem:[#allocation6 + $0x28] sm:$0xff] %vm1021, %v900
    %1028 = vst.msk [vmem:[#allocation6 + $0x30] sm:$0xff] %vm1021, %v912
    %1029 = vst.msk [vmem:[#allocation6 + $0x38] sm:$0xff] %vm1021, %v924
    %1030 = vst.msk [vmem:[#allocation6 + $0x40] sm:$0xff] %vm1021, %v936
    %1031 = vst.msk [vmem:[#allocation6 + $0x48] sm:$0xff] %vm1021, %v948
    %1032 = vst.msk [vmem:[#allocation6 + $0x50] sm:$0xff] %vm1021, %v960
    %1033 = vst.msk [vmem:[#allocation6 + $0x58] sm:$0xff] %vm1021, %v972
    %1034 = vst.msk [vmem:[#allocation6 + $0x60] sm:$0xff] %vm1021, %v984
    %1035 = vst.msk [vmem:[#allocation6 + $0x68] sm:$0xff] %vm1021, %v996
    %1036 = vst.msk [vmem:[#allocation6 + $0x70] sm:$0xff] %vm1021, %v1008
    %1037 = vst.msk [vmem:[#allocation6 + $0x78] sm:$0xff] %vm1021, %v1020
    // Predicated region
    $region10: #{tpu_custom_call.1} parent=1 // pred_check
      _
    $region11: #{tpu_custom_call.1} parent=1 // pred_check_branch
      %1039 = sbr.rel (0) target = $region13
    $region12: #{tpu_custom_call.1} parent=1 // pred_region
      %1041 = vsyncadd [#allocation5], 0
      %s1042 = sshll.u32 [#allocation6], 4
      %s1043 = int_to_ptr.vmem [resolvable:$true] %s1042
      %s1044 = sshll.u32 %s1, 4
      %s1045 = int_to_ptr.hbm [resolvable:$true] %s1044
      %1050 = dma.vmem_to_hbm [thread:$0]  %s1043, 2048, %s1045, [#allocation5], 128, 128, 8
    $region13: #{tpu_custom_call.1} parent=1 // pred_fallthru
      _
    // Predicated region
    $region14: #{tpu_custom_call.1} parent=1 // pred_check
      _
    $region15: #{tpu_custom_call.1} parent=1 // pred_check_branch
      %1052 = sbr.rel (0) target = $region17
    $region16: #{tpu_custom_call.1} parent=1 // pred_region
      %1054 = dma.done [#allocation5], 2048
    $region17: #{tpu_custom_call.1} parent=1 // pred_fallthru
      _
    %1055 = vsyncpa [#allocation4], 1
    %1056 = vsyncpa [#allocation5], 1

</llo_original>
